<compile_context>
chip_gen: v6e
topology: v6e:2x2x1
jax: 0.10.0
libtpu: 0.0.40
codegen_flags: <defaults>
</compile_context>

<pallas_src>
import math
import jax
import jax.numpy as jnp
from jax.experimental import pallas as pl
from jax.experimental.pallas import tpu as pltpu


def _round_up(a, m):
    return (a + m - 1) // m * m


def _spatial_weights_kernel(x1_ref, x2_ref, w1_ref, b1_ref, w2_ref, b2_ref, o_ref):
    # x1_ref, x2_ref: (C, TILE_P)  VMEM  -- channels-first pixel tile
    # w1_ref: (HID, 2C) SMEM, b1_ref: (1, HID) SMEM
    # w2_ref: (2, HID)  SMEM, b2_ref: (1, 2)   SMEM
    # o_ref:  (2, TILE_P) VMEM  -- lane-dense output tile
    C, _ = x1_ref.shape
    HID = w1_ref.shape[0]

    x1 = x1_ref[...]
    x2 = x2_ref[...]

    # First 1x1 conv, concat split into the two weight halves, + ReLU.
    # Unrolled VPU broadcast-FMAs (channel counts are tiny and static).
    h_rows = []
    for o in range(HID):
        acc = w1_ref[o, 0] * x1[0:1, :]
        for c in range(1, C):
            acc = acc + w1_ref[o, c] * x1[c:c + 1, :]
        for c in range(C):
            acc = acc + w1_ref[o, C + c] * x2[c:c + 1, :]
        acc = acc + b1_ref[0, o]
        h_rows.append(jnp.maximum(acc, 0.0))                 # ReLU

    # Second 1x1 conv + sigmoid (exp on EUP).
    y_rows = []
    for j in range(2):
        acc = w2_ref[j, 0] * h_rows[0]
        for o in range(1, HID):
            acc = acc + w2_ref[j, o] * h_rows[o]
        acc = acc + b2_ref[0, j]
        y_rows.append(jax.nn.sigmoid(acc))

    o_ref[...] = jnp.concatenate(y_rows, axis=0).astype(o_ref.dtype)


def spatial_weights_forward(x1, x2, w1, b1, w2, b2, *, max_tile_p=8192):
    """x1, x2: (B, C, H, W) float32 (NCHW, matching PyTorch).
    Returns (2, B, 1, H, W) float32."""
    B, C, H, W = x1.shape
    HID = w1.shape[0]
    HW = H * W

    # Large, lane-aligned pixel tile (mem-bound op: big tiles amortize the
    # ~0.35us per-grid-step overhead).  Pad the pixel axis only if needed.
    tile_p = min(max_tile_p, _round_up(HW, 128))
    HWp = _round_up(HW, tile_p)
    n_pt = HWp // tile_p

    # Pure reshapes of NCHW memory -- no transposes, no extra HBM round trips.
    x1_r = x1.reshape(B, C, HW)
    x2_r = x2.reshape(B, C, HW)
    if HWp != HW:
        pad = ((0, 0), (0, 0), (0, HWp - HW))
        x1_r = jnp.pad(x1_r, pad)
        x2_r = jnp.pad(x2_r, pad)

    # Conv2d 1x1 weights (out, in, 1, 1) -> (out, in); biases as 2-D SMEM rows.
    w1_mat = w1.reshape(HID, 2 * C)
    w2_mat = w2.reshape(2, HID)
    b1_row = b1.reshape(1, HID)
    b2_row = b2.reshape(1, 2)

    Np = B * HWp
    cost = pl.CostEstimate(
        flops=2 * B * HW * (2 * C * HID + HID * 2),
        transcendentals=2 * B * HW,
        bytes_accessed=B * HW * (2 * C + 2) * 4,
    )

    out_flat = pl.pallas_call(
        _spatial_weights_kernel,
        out_shape=jax.ShapeDtypeStruct((2, Np), jnp.float32),
        grid_spec=pltpu.PrefetchScalarGridSpec(
            num_scalar_prefetch=0,
            grid=(B, n_pt),
            in_specs=[
                pl.BlockSpec((None, C, tile_p), lambda b, p: (b, 0, p)),
                pl.BlockSpec((None, C, tile_p), lambda b, p: (b, 0, p)),
                pl.BlockSpec(memory_space=pltpu.MemorySpace.SMEM),
                pl.BlockSpec(memory_space=pltpu.MemorySpace.SMEM),
                pl.BlockSpec(memory_space=pltpu.MemorySpace.SMEM),
                pl.BlockSpec(memory_space=pltpu.MemorySpace.SMEM),
            ],
            out_specs=pl.BlockSpec((2, tile_p), lambda b, p: (0, b * n_pt + p)),
        ),
        compiler_params=pltpu.CompilerParams(
            dimension_semantics=("parallel", "parallel")),
        cost_estimate=cost,
    )(x1_r, x2_r, w1_mat, b1_row, w2_mat, b2_row)

    # (2, B*HWp) -> (2, B, HWp) -> drop padding -> (2, B, 1, H, W); no transpose.
    out = out_flat.reshape(2, B, HWp)
    if HWp != HW:
        out = out[:, :, :HW]
    return out.reshape(2, B, 1, H, W)


def _init_conv_params(key, out_ch, in_ch):
    """Deterministic init mimicking PyTorch Conv2d default (uniform +/- 1/sqrt(fan_in))."""
    k_w, k_b = jax.random.split(key)
    bound = 1.0 / math.sqrt(in_ch)  # 1x1 kernel -> fan_in = in_ch
    w = jax.random.uniform(k_w, (out_ch, in_ch, 1, 1), jnp.float32, -bound, bound)
    b = jax.random.uniform(k_b, (out_ch,), jnp.float32, -bound, bound)
    return w, b


def _reference_forward(x1, x2, w1, b1, w2, b2):
    # Pure-JAX reference of the PyTorch forward (1x1 convs as einsums).
    B, C, H, W = x1.shape
    x = jnp.concatenate([x1, x2], axis=1)                       # (B, 2C, H, W)
    h = jnp.einsum('bchw,oc->bohw', x, w1.reshape(w1.shape[0], w1.shape[1]))
    h = h + b1[None, :, None, None]
    h = jnp.maximum(h, 0.0)
    y = jnp.einsum('bchw,oc->bohw', h, w2.reshape(w2.shape[0], w2.shape[1]))
    y = y + b2[None, :, None, None]
    y = jax.nn.sigmoid(y)                                       # (B, 2, H, W)
    return jnp.transpose(y.reshape(B, 2, 1, H, W), (1, 0, 2, 3, 4))


if __name__ == "__main__":
    B, C, H, W = 2, 4, 16, 16   # dim = C = 4, reduction = 1
    reduction = 1
    hidden = C // reduction

    key = jax.random.PRNGKey(0)
    k_x1, k_x2, k_c1, k_c2 = jax.random.split(key, 4)

    x1 = jax.random.normal(k_x1, (B, C, H, W), jnp.float32)
    x2 = jax.random.normal(k_x2, (B, C, H, W), jnp.float32)

    w1, b1 = _init_conv_params(k_c1, hidden, 2 * C)   # Conv2d(2*dim -> dim//reduction, 1x1)
    w2, b2 = _init_conv_params(k_c2, 2, hidden)       # Conv2d(dim//reduction -> 2, 1x1)

    out = spatial_weights_forward(x1, x2, w1, b1, w2, b2)
    out = jax.block_until_ready(out)

    ref = _reference_forward(x1, x2, w1, b1, w2, b2)
    assert out.shape == (2, B, 1, H, W), out.shape
    assert jnp.allclose(out, ref, atol=1e-5, rtol=1e-5), "mismatch vs reference"

    print("KERNEL_OK")
</pallas_src>

<mosaic_0001>
module attributes {stable_mosaic.version = 11 : i64} {
  func.func @_spatial_weights_kernel(%arg0: i32, %arg1: i32, %arg2: memref<1x4x256xf32, #tpu.memory_space<vmem>>, %arg3: memref<1x4x256xf32, #tpu.memory_space<vmem>>, %arg4: memref<4x8xf32, #tpu.memory_space<smem>>, %arg5: memref<1x4xf32, #tpu.memory_space<smem>>, %arg6: memref<2x4xf32, #tpu.memory_space<smem>>, %arg7: memref<1x2xf32, #tpu.memory_space<smem>>, %arg8: memref<2x256xf32, #tpu.memory_space<vmem>>) attributes {dimension_semantics = [#tpu.dimension_semantics<parallel>, #tpu.dimension_semantics<parallel>], iteration_bounds = array<i64: 2, 1>, scalar_prefetch = 0 : i64, scratch_operands = 0 : i64, tpu.core_type = #tpu.core_type<tc>, window_params = [{transform_indices = @transform_0, window_bounds = array<i64: 1, 4, 256>}, {transform_indices = @transform_1, window_bounds = array<i64: 1, 4, 256>}, {transform_indices = @transform_2, window_bounds = array<i64: 4, 8>}, {transform_indices = @transform_3, window_bounds = array<i64: 1, 4>}, {transform_indices = @transform_4, window_bounds = array<i64: 2, 4>}, {transform_indices = @transform_5, window_bounds = array<i64: 1, 2>}, {transform_indices = @transform_6, window_bounds = array<i64: 2, 256>}]} {
    %c0 = arith.constant 0 : index
    %c0_0 = arith.constant 0 : index
    %c0_1 = arith.constant 0 : index
    %0 = vector.load %arg2[%c0, %c0_0, %c0_1] : memref<1x4x256xf32, #tpu.memory_space<vmem>>, vector<1x4x256xf32>
    %1 = vector.shape_cast %0 : vector<1x4x256xf32> to vector<4x256xf32>
    %c0_2 = arith.constant 0 : index
    %c0_3 = arith.constant 0 : index
    %c0_4 = arith.constant 0 : index
    %2 = vector.load %arg3[%c0_2, %c0_3, %c0_4] : memref<1x4x256xf32, #tpu.memory_space<vmem>>, vector<1x4x256xf32>
    %3 = vector.shape_cast %2 : vector<1x4x256xf32> to vector<4x256xf32>
    %c0_5 = arith.constant 0 : index
    %c0_6 = arith.constant 0 : index
    %4 = memref.load %arg4[%c0_5, %c0_6] : memref<4x8xf32, #tpu.memory_space<smem>>
    %5 = vector.extract_strided_slice %1 {offsets = [0, 0], sizes = [1, 256], strides = [1, 1]} : vector<4x256xf32> to vector<1x256xf32>
    %6 = vector.broadcast %4 : f32 to vector<1x256xf32>
    %7 = arith.mulf %6, %5 : vector<1x256xf32>
    %c0_7 = arith.constant 0 : index
    %c1 = arith.constant 1 : index
    %8 = memref.load %arg4[%c0_7, %c1] : memref<4x8xf32, #tpu.memory_space<smem>>
    %9 = vector.extract_strided_slice %1 {offsets = [1, 0], sizes = [1, 256], strides = [1, 1]} : vector<4x256xf32> to vector<1x256xf32>
    %10 = vector.broadcast %8 : f32 to vector<1x256xf32>
    %11 = arith.mulf %10, %9 : vector<1x256xf32>
    %12 = arith.addf %7, %11 : vector<1x256xf32>
    %c0_8 = arith.constant 0 : index
    %c2 = arith.constant 2 : index
    %13 = memref.load %arg4[%c0_8, %c2] : memref<4x8xf32, #tpu.memory_space<smem>>
    %14 = vector.extract_strided_slice %1 {offsets = [2, 0], sizes = [1, 256], strides = [1, 1]} : vector<4x256xf32> to vector<1x256xf32>
    %15 = vector.broadcast %13 : f32 to vector<1x256xf32>
    %16 = arith.mulf %15, %14 : vector<1x256xf32>
    %17 = arith.addf %12, %16 : vector<1x256xf32>
    %c0_9 = arith.constant 0 : index
    %c3 = arith.constant 3 : index
    %18 = memref.load %arg4[%c0_9, %c3] : memref<4x8xf32, #tpu.memory_space<smem>>
    %19 = vector.extract_strided_slice %1 {offsets = [3, 0], sizes = [1, 256], strides = [1, 1]} : vector<4x256xf32> to vector<1x256xf32>
    %20 = vector.broadcast %18 : f32 to vector<1x256xf32>
    %21 = arith.mulf %20, %19 : vector<1x256xf32>
    %22 = arith.addf %17, %21 : vector<1x256xf32>
    %c0_10 = arith.constant 0 : index
    %c4 = arith.constant 4 : index
    %23 = memref.load %arg4[%c0_10, %c4] : memref<4x8xf32, #tpu.memory_space<smem>>
    %24 = vector.extract_strided_slice %3 {offsets = [0, 0], sizes = [1, 256], strides = [1, 1]} : vector<4x256xf32> to vector<1x256xf32>
    %25 = vector.broadcast %23 : f32 to vector<1x256xf32>
    %26 = arith.mulf %25, %24 : vector<1x256xf32>
    %27 = arith.addf %22, %26 : vector<1x256xf32>
    %c0_11 = arith.constant 0 : index
    %c5 = arith.constant 5 : index
    %28 = memref.load %arg4[%c0_11, %c5] : memref<4x8xf32, #tpu.memory_space<smem>>
    %29 = vector.extract_strided_slice %3 {offsets = [1, 0], sizes = [1, 256], strides = [1, 1]} : vector<4x256xf32> to vector<1x256xf32>
    %30 = vector.broadcast %28 : f32 to vector<1x256xf32>
    %31 = arith.mulf %30, %29 : vector<1x256xf32>
    %32 = arith.addf %27, %31 : vector<1x256xf32>
    %c0_12 = arith.constant 0 : index
    %c6 = arith.constant 6 : index
    %33 = memref.load %arg4[%c0_12, %c6] : memref<4x8xf32, #tpu.memory_space<smem>>
    %34 = vector.extract_strided_slice %3 {offsets = [2, 0], sizes = [1, 256], strides = [1, 1]} : vector<4x256xf32> to vector<1x256xf32>
    %35 = vector.broadcast %33 : f32 to vector<1x256xf32>
    %36 = arith.mulf %35, %34 : vector<1x256xf32>
    %37 = arith.addf %32, %36 : vector<1x256xf32>
    %c0_13 = arith.constant 0 : index
    %c7 = arith.constant 7 : index
    %38 = memref.load %arg4[%c0_13, %c7] : memref<4x8xf32, #tpu.memory_space<smem>>
    %39 = vector.extract_strided_slice %3 {offsets = [3, 0], sizes = [1, 256], strides = [1, 1]} : vector<4x256xf32> to vector<1x256xf32>
    %40 = vector.broadcast %38 : f32 to vector<1x256xf32>
    %41 = arith.mulf %40, %39 : vector<1x256xf32>
    %42 = arith.addf %37, %41 : vector<1x256xf32>
    %c0_14 = arith.constant 0 : index
    %c0_15 = arith.constant 0 : index
    %43 = memref.load %arg5[%c0_14, %c0_15] : memref<1x4xf32, #tpu.memory_space<smem>>
    %44 = vector.broadcast %43 : f32 to vector<1x256xf32>
    %45 = arith.addf %42, %44 : vector<1x256xf32>
    %cst = arith.constant 0.000000e+00 : f32
    %46 = vector.broadcast %cst : f32 to vector<1x256xf32>
    %47 = arith.maximumf %45, %46 : vector<1x256xf32>
    %c1_16 = arith.constant 1 : index
    %c0_17 = arith.constant 0 : index
    %48 = memref.load %arg4[%c1_16, %c0_17] : memref<4x8xf32, #tpu.memory_space<smem>>
    %49 = vector.extract_strided_slice %1 {offsets = [0, 0], sizes = [1, 256], strides = [1, 1]} : vector<4x256xf32> to vector<1x256xf32>
    %50 = vector.broadcast %48 : f32 to vector<1x256xf32>
    %51 = arith.mulf %50, %49 : vector<1x256xf32>
    %c1_18 = arith.constant 1 : index
    %c1_19 = arith.constant 1 : index
    %52 = memref.load %arg4[%c1_18, %c1_19] : memref<4x8xf32, #tpu.memory_space<smem>>
    %53 = vector.extract_strided_slice %1 {offsets = [1, 0], sizes = [1, 256], strides = [1, 1]} : vector<4x256xf32> to vector<1x256xf32>
    %54 = vector.broadcast %52 : f32 to vector<1x256xf32>
    %55 = arith.mulf %54, %53 : vector<1x256xf32>
    %56 = arith.addf %51, %55 : vector<1x256xf32>
    %c1_20 = arith.constant 1 : index
    %c2_21 = arith.constant 2 : index
    %57 = memref.load %arg4[%c1_20, %c2_21] : memref<4x8xf32, #tpu.memory_space<smem>>
    %58 = vector.extract_strided_slice %1 {offsets = [2, 0], sizes = [1, 256], strides = [1, 1]} : vector<4x256xf32> to vector<1x256xf32>
    %59 = vector.broadcast %57 : f32 to vector<1x256xf32>
    %60 = arith.mulf %59, %58 : vector<1x256xf32>
    %61 = arith.addf %56, %60 : vector<1x256xf32>
    %c1_22 = arith.constant 1 : index
    %c3_23 = arith.constant 3 : index
    %62 = memref.load %arg4[%c1_22, %c3_23] : memref<4x8xf32, #tpu.memory_space<smem>>
    %63 = vector.extract_strided_slice %1 {offsets = [3, 0], sizes = [1, 256], strides = [1, 1]} : vector<4x256xf32> to vector<1x256xf32>
    %64 = vector.broadcast %62 : f32 to vector<1x256xf32>
    %65 = arith.mulf %64, %63 : vector<1x256xf32>
    %66 = arith.addf %61, %65 : vector<1x256xf32>
    %c1_24 = arith.constant 1 : index
    %c4_25 = arith.constant 4 : index
    %67 = memref.load %arg4[%c1_24, %c4_25] : memref<4x8xf32, #tpu.memory_space<smem>>
    %68 = vector.extract_strided_slice %3 {offsets = [0, 0], sizes = [1, 256], strides = [1, 1]} : vector<4x256xf32> to vector<1x256xf32>
    %69 = vector.broadcast %67 : f32 to vector<1x256xf32>
    %70 = arith.mulf %69, %68 : vector<1x256xf32>
    %71 = arith.addf %66, %70 : vector<1x256xf32>
    %c1_26 = arith.constant 1 : index
    %c5_27 = arith.constant 5 : index
    %72 = memref.load %arg4[%c1_26, %c5_27] : memref<4x8xf32, #tpu.memory_space<smem>>
    %73 = vector.extract_strided_slice %3 {offsets = [1, 0], sizes = [1, 256], strides = [1, 1]} : vector<4x256xf32> to vector<1x256xf32>
    %74 = vector.broadcast %72 : f32 to vector<1x256xf32>
    %75 = arith.mulf %74, %73 : vector<1x256xf32>
    %76 = arith.addf %71, %75 : vector<1x256xf32>
    %c1_28 = arith.constant 1 : index
    %c6_29 = arith.constant 6 : index
    %77 = memref.load %arg4[%c1_28, %c6_29] : memref<4x8xf32, #tpu.memory_space<smem>>
    %78 = vector.extract_strided_slice %3 {offsets = [2, 0], sizes = [1, 256], strides = [1, 1]} : vector<4x256xf32> to vector<1x256xf32>
    %79 = vector.broadcast %77 : f32 to vector<1x256xf32>
    %80 = arith.mulf %79, %78 : vector<1x256xf32>
    %81 = arith.addf %76, %80 : vector<1x256xf32>
    %c1_30 = arith.constant 1 : index
    %c7_31 = arith.constant 7 : index
    %82 = memref.load %arg4[%c1_30, %c7_31] : memref<4x8xf32, #tpu.memory_space<smem>>
    %83 = vector.extract_strided_slice %3 {offsets = [3, 0], sizes = [1, 256], strides = [1, 1]} : vector<4x256xf32> to vector<1x256xf32>
    %84 = vector.broadcast %82 : f32 to vector<1x256xf32>
    %85 = arith.mulf %84, %83 : vector<1x256xf32>
    %86 = arith.addf %81, %85 : vector<1x256xf32>
    %c0_32 = arith.constant 0 : index
    %c1_33 = arith.constant 1 : index
    %87 = memref.load %arg5[%c0_32, %c1_33] : memref<1x4xf32, #tpu.memory_space<smem>>
    %88 = vector.broadcast %87 : f32 to vector<1x256xf32>
    %89 = arith.addf %86, %88 : vector<1x256xf32>
    %cst_34 = arith.constant 0.000000e+00 : f32
    %90 = vector.broadcast %cst_34 : f32 to vector<1x256xf32>
    %91 = arith.maximumf %89, %90 : vector<1x256xf32>
    %c2_35 = arith.constant 2 : index
    %c0_36 = arith.constant 0 : index
    %92 = memref.load %arg4[%c2_35, %c0_36] : memref<4x8xf32, #tpu.memory_space<smem>>
    %93 = vector.extract_strided_slice %1 {offsets = [0, 0], sizes = [1, 256], strides = [1, 1]} : vector<4x256xf32> to vector<1x256xf32>
    %94 = vector.broadcast %92 : f32 to vector<1x256xf32>
    %95 = arith.mulf %94, %93 : vector<1x256xf32>
    %c2_37 = arith.constant 2 : index
    %c1_38 = arith.constant 1 : index
    %96 = memref.load %arg4[%c2_37, %c1_38] : memref<4x8xf32, #tpu.memory_space<smem>>
    %97 = vector.extract_strided_slice %1 {offsets = [1, 0], sizes = [1, 256], strides = [1, 1]} : vector<4x256xf32> to vector<1x256xf32>
    %98 = vector.broadcast %96 : f32 to vector<1x256xf32>
    %99 = arith.mulf %98, %97 : vector<1x256xf32>
    %100 = arith.addf %95, %99 : vector<1x256xf32>
    %c2_39 = arith.constant 2 : index
    %c2_40 = arith.constant 2 : index
    %101 = memref.load %arg4[%c2_39, %c2_40] : memref<4x8xf32, #tpu.memory_space<smem>>
    %102 = vector.extract_strided_slice %1 {offsets = [2, 0], sizes = [1, 256], strides = [1, 1]} : vector<4x256xf32> to vector<1x256xf32>
    %103 = vector.broadcast %101 : f32 to vector<1x256xf32>
    %104 = arith.mulf %103, %102 : vector<1x256xf32>
    %105 = arith.addf %100, %104 : vector<1x256xf32>
    %c2_41 = arith.constant 2 : index
    %c3_42 = arith.constant 3 : index
    %106 = memref.load %arg4[%c2_41, %c3_42] : memref<4x8xf32, #tpu.memory_space<smem>>
    %107 = vector.extract_strided_slice %1 {offsets = [3, 0], sizes = [1, 256], strides = [1, 1]} : vector<4x256xf32> to vector<1x256xf32>
    %108 = vector.broadcast %106 : f32 to vector<1x256xf32>
    %109 = arith.mulf %108, %107 : vector<1x256xf32>
    %110 = arith.addf %105, %109 : vector<1x256xf32>
    %c2_43 = arith.constant 2 : index
    %c4_44 = arith.constant 4 : index
    %111 = memref.load %arg4[%c2_43, %c4_44] : memref<4x8xf32, #tpu.memory_space<smem>>
    %112 = vector.extract_strided_slice %3 {offsets = [0, 0], sizes = [1, 256], strides = [1, 1]} : vector<4x256xf32> to vector<1x256xf32>
    %113 = vector.broadcast %111 : f32 to vector<1x256xf32>
    %114 = arith.mulf %113, %112 : vector<1x256xf32>
    %115 = arith.addf %110, %114 : vector<1x256xf32>
    %c2_45 = arith.constant 2 : index
    %c5_46 = arith.constant 5 : index
    %116 = memref.load %arg4[%c2_45, %c5_46] : memref<4x8xf32, #tpu.memory_space<smem>>
    %117 = vector.extract_strided_slice %3 {offsets = [1, 0], sizes = [1, 256], strides = [1, 1]} : vector<4x256xf32> to vector<1x256xf32>
    %118 = vector.broadcast %116 : f32 to vector<1x256xf32>
    %119 = arith.mulf %118, %117 : vector<1x256xf32>
    %120 = arith.addf %115, %119 : vector<1x256xf32>
    %c2_47 = arith.constant 2 : index
    %c6_48 = arith.constant 6 : index
    %121 = memref.load %arg4[%c2_47, %c6_48] : memref<4x8xf32, #tpu.memory_space<smem>>
    %122 = vector.extract_strided_slice %3 {offsets = [2, 0], sizes = [1, 256], strides = [1, 1]} : vector<4x256xf32> to vector<1x256xf32>
    %123 = vector.broadcast %121 : f32 to vector<1x256xf32>
    %124 = arith.mulf %123, %122 : vector<1x256xf32>
    %125 = arith.addf %120, %124 : vector<1x256xf32>
    %c2_49 = arith.constant 2 : index
    %c7_50 = arith.constant 7 : index
    %126 = memref.load %arg4[%c2_49, %c7_50] : memref<4x8xf32, #tpu.memory_space<smem>>
    %127 = vector.extract_strided_slice %3 {offsets = [3, 0], sizes = [1, 256], strides = [1, 1]} : vector<4x256xf32> to vector<1x256xf32>
    %128 = vector.broadcast %126 : f32 to vector<1x256xf32>
    %129 = arith.mulf %128, %127 : vector<1x256xf32>
    %130 = arith.addf %125, %129 : vector<1x256xf32>
    %c0_51 = arith.constant 0 : index
    %c2_52 = arith.constant 2 : index
    %131 = memref.load %arg5[%c0_51, %c2_52] : memref<1x4xf32, #tpu.memory_space<smem>>
    %132 = vector.broadcast %131 : f32 to vector<1x256xf32>
    %133 = arith.addf %130, %132 : vector<1x256xf32>
    %cst_53 = arith.constant 0.000000e+00 : f32
    %134 = vector.broadcast %cst_53 : f32 to vector<1x256xf32>
    %135 = arith.maximumf %133, %134 : vector<1x256xf32>
    %c3_54 = arith.constant 3 : index
    %c0_55 = arith.constant 0 : index
    %136 = memref.load %arg4[%c3_54, %c0_55] : memref<4x8xf32, #tpu.memory_space<smem>>
    %137 = vector.extract_strided_slice %1 {offsets = [0, 0], sizes = [1, 256], strides = [1, 1]} : vector<4x256xf32> to vector<1x256xf32>
    %138 = vector.broadcast %136 : f32 to vector<1x256xf32>
    %139 = arith.mulf %138, %137 : vector<1x256xf32>
    %c3_56 = arith.constant 3 : index
    %c1_57 = arith.constant 1 : index
    %140 = memref.load %arg4[%c3_56, %c1_57] : memref<4x8xf32, #tpu.memory_space<smem>>
    %141 = vector.extract_strided_slice %1 {offsets = [1, 0], sizes = [1, 256], strides = [1, 1]} : vector<4x256xf32> to vector<1x256xf32>
    %142 = vector.broadcast %140 : f32 to vector<1x256xf32>
    %143 = arith.mulf %142, %141 : vector<1x256xf32>
    %144 = arith.addf %139, %143 : vector<1x256xf32>
    %c3_58 = arith.constant 3 : index
    %c2_59 = arith.constant 2 : index
    %145 = memref.load %arg4[%c3_58, %c2_59] : memref<4x8xf32, #tpu.memory_space<smem>>
    %146 = vector.extract_strided_slice %1 {offsets = [2, 0], sizes = [1, 256], strides = [1, 1]} : vector<4x256xf32> to vector<1x256xf32>
    %147 = vector.broadcast %145 : f32 to vector<1x256xf32>
    %148 = arith.mulf %147, %146 : vector<1x256xf32>
    %149 = arith.addf %144, %148 : vector<1x256xf32>
    %c3_60 = arith.constant 3 : index
    %c3_61 = arith.constant 3 : index
    %150 = memref.load %arg4[%c3_60, %c3_61] : memref<4x8xf32, #tpu.memory_space<smem>>
    %151 = vector.extract_strided_slice %1 {offsets = [3, 0], sizes = [1, 256], strides = [1, 1]} : vector<4x256xf32> to vector<1x256xf32>
    %152 = vector.broadcast %150 : f32 to vector<1x256xf32>
    %153 = arith.mulf %152, %151 : vector<1x256xf32>
    %154 = arith.addf %149, %153 : vector<1x256xf32>
    %c3_62 = arith.constant 3 : index
    %c4_63 = arith.constant 4 : index
    %155 = memref.load %arg4[%c3_62, %c4_63] : memref<4x8xf32, #tpu.memory_space<smem>>
    %156 = vector.extract_strided_slice %3 {offsets = [0, 0], sizes = [1, 256], strides = [1, 1]} : vector<4x256xf32> to vector<1x256xf32>
    %157 = vector.broadcast %155 : f32 to vector<1x256xf32>
    %158 = arith.mulf %157, %156 : vector<1x256xf32>
    %159 = arith.addf %154, %158 : vector<1x256xf32>
    %c3_64 = arith.constant 3 : index
    %c5_65 = arith.constant 5 : index
    %160 = memref.load %arg4[%c3_64, %c5_65] : memref<4x8xf32, #tpu.memory_space<smem>>
    %161 = vector.extract_strided_slice %3 {offsets = [1, 0], sizes = [1, 256], strides = [1, 1]} : vector<4x256xf32> to vector<1x256xf32>
    %162 = vector.broadcast %160 : f32 to vector<1x256xf32>
    %163 = arith.mulf %162, %161 : vector<1x256xf32>
    %164 = arith.addf %159, %163 : vector<1x256xf32>
    %c3_66 = arith.constant 3 : index
    %c6_67 = arith.constant 6 : index
    %165 = memref.load %arg4[%c3_66, %c6_67] : memref<4x8xf32, #tpu.memory_space<smem>>
    %166 = vector.extract_strided_slice %3 {offsets = [2, 0], sizes = [1, 256], strides = [1, 1]} : vector<4x256xf32> to vector<1x256xf32>
    %167 = vector.broadcast %165 : f32 to vector<1x256xf32>
    %168 = arith.mulf %167, %166 : vector<1x256xf32>
    %169 = arith.addf %164, %168 : vector<1x256xf32>
    %c3_68 = arith.constant 3 : index
    %c7_69 = arith.constant 7 : index
    %170 = memref.load %arg4[%c3_68, %c7_69] : memref<4x8xf32, #tpu.memory_space<smem>>
    %171 = vector.extract_strided_slice %3 {offsets = [3, 0], sizes = [1, 256], strides = [1, 1]} : vector<4x256xf32> to vector<1x256xf32>
    %172 = vector.broadcast %170 : f32 to vector<1x256xf32>
    %173 = arith.mulf %172, %171 : vector<1x256xf32>
    %174 = arith.addf %169, %173 : vector<1x256xf32>
    %c0_70 = arith.constant 0 : index
    %c3_71 = arith.constant 3 : index
    %175 = memref.load %arg5[%c0_70, %c3_71] : memref<1x4xf32, #tpu.memory_space<smem>>
    %176 = vector.broadcast %175 : f32 to vector<1x256xf32>
    %177 = arith.addf %174, %176 : vector<1x256xf32>
    %cst_72 = arith.constant 0.000000e+00 : f32
    %178 = vector.broadcast %cst_72 : f32 to vector<1x256xf32>
    %179 = arith.maximumf %177, %178 : vector<1x256xf32>
    %c0_73 = arith.constant 0 : index
    %c0_74 = arith.constant 0 : index
    %180 = memref.load %arg6[%c0_73, %c0_74] : memref<2x4xf32, #tpu.memory_space<smem>>
    %181 = vector.broadcast %180 : f32 to vector<1x256xf32>
    %182 = arith.mulf %181, %47 : vector<1x256xf32>
    %c0_75 = arith.constant 0 : index
    %c1_76 = arith.constant 1 : index
    %183 = memref.load %arg6[%c0_75, %c1_76] : memref<2x4xf32, #tpu.memory_space<smem>>
    %184 = vector.broadcast %183 : f32 to vector<1x256xf32>
    %185 = arith.mulf %184, %91 : vector<1x256xf32>
    %186 = arith.addf %182, %185 : vector<1x256xf32>
    %c0_77 = arith.constant 0 : index
    %c2_78 = arith.constant 2 : index
    %187 = memref.load %arg6[%c0_77, %c2_78] : memref<2x4xf32, #tpu.memory_space<smem>>
    %188 = vector.broadcast %187 : f32 to vector<1x256xf32>
    %189 = arith.mulf %188, %135 : vector<1x256xf32>
    %190 = arith.addf %186, %189 : vector<1x256xf32>
    %c0_79 = arith.constant 0 : index
    %c3_80 = arith.constant 3 : index
    %191 = memref.load %arg6[%c0_79, %c3_80] : memref<2x4xf32, #tpu.memory_space<smem>>
    %192 = vector.broadcast %191 : f32 to vector<1x256xf32>
    %193 = arith.mulf %192, %179 : vector<1x256xf32>
    %194 = arith.addf %190, %193 : vector<1x256xf32>
    %c0_81 = arith.constant 0 : index
    %c0_82 = arith.constant 0 : index
    %195 = memref.load %arg7[%c0_81, %c0_82] : memref<1x2xf32, #tpu.memory_space<smem>>
    %196 = vector.broadcast %195 : f32 to vector<1x256xf32>
    %197 = arith.addf %194, %196 : vector<1x256xf32>
    %198 = arith.negf %197 : vector<1x256xf32>
    %199 = math.exp %198 : vector<1x256xf32>
    %cst_83 = arith.constant 1.000000e+00 : f32
    %200 = vector.broadcast %cst_83 : f32 to vector<1x256xf32>
    %201 = arith.addf %200, %199 : vector<1x256xf32>
    %202 = arith.divf %200, %201 : vector<1x256xf32>
    %c1_84 = arith.constant 1 : index
    %c0_85 = arith.constant 0 : index
    %203 = memref.load %arg6[%c1_84, %c0_85] : memref<2x4xf32, #tpu.memory_space<smem>>
    %204 = vector.broadcast %203 : f32 to vector<1x256xf32>
    %205 = arith.mulf %204, %47 : vector<1x256xf32>
    %c1_86 = arith.constant 1 : index
    %c1_87 = arith.constant 1 : index
    %206 = memref.load %arg6[%c1_86, %c1_87] : memref<2x4xf32, #tpu.memory_space<smem>>
    %207 = vector.broadcast %206 : f32 to vector<1x256xf32>
    %208 = arith.mulf %207, %91 : vector<1x256xf32>
    %209 = arith.addf %205, %208 : vector<1x256xf32>
    %c1_88 = arith.constant 1 : index
    %c2_89 = arith.constant 2 : index
    %210 = memref.load %arg6[%c1_88, %c2_89] : memref<2x4xf32, #tpu.memory_space<smem>>
    %211 = vector.broadcast %210 : f32 to vector<1x256xf32>
    %212 = arith.mulf %211, %135 : vector<1x256xf32>
    %213 = arith.addf %209, %212 : vector<1x256xf32>
    %c1_90 = arith.constant 1 : index
    %c3_91 = arith.constant 3 : index
    %214 = memref.load %arg6[%c1_90, %c3_91] : memref<2x4xf32, #tpu.memory_space<smem>>
    %215 = vector.broadcast %214 : f32 to vector<1x256xf32>
    %216 = arith.mulf %215, %179 : vector<1x256xf32>
    %217 = arith.addf %213, %216 : vector<1x256xf32>
    %c0_92 = arith.constant 0 : index
    %c1_93 = arith.constant 1 : index
    %218 = memref.load %arg7[%c0_92, %c1_93] : memref<1x2xf32, #tpu.memory_space<smem>>
    %219 = vector.broadcast %218 : f32 to vector<1x256xf32>
    %220 = arith.addf %217, %219 : vector<1x256xf32>
    %221 = arith.negf %220 : vector<1x256xf32>
    %222 = math.exp %221 : vector<1x256xf32>
    %cst_94 = arith.constant 1.000000e+00 : f32
    %223 = vector.broadcast %cst_94 : f32 to vector<1x256xf32>
    %224 = arith.addf %223, %222 : vector<1x256xf32>
    %225 = arith.divf %223, %224 : vector<1x256xf32>
    %226 = tpu.concatenate %202, %225 in 0 : vector<1x256xf32>, vector<1x256xf32> -> vector<2x256xf32>
    %c0_95 = arith.constant 0 : index
    %c0_96 = arith.constant 0 : index
    %227 = vector.load %arg8[%c0_95, %c0_96] : memref<2x256xf32, #tpu.memory_space<vmem>>, vector<2x256xf32>
    tpu.vector_store %arg8[%c0_95, %c0_96], %226 {strides = array<i32>} : memref<2x256xf32, #tpu.memory_space<vmem>>, vector<2x256xf32>,
    return
  }
  func.func @transform_0(%arg0: i32, %arg1: i32) -> (i32, i32, i32) {
    %c0_i32 = arith.constant 0 : i32
    %c0_i32_0 = arith.constant 0 : i32
    return %arg0, %c0_i32, %arg1 : i32, i32, i32
  }
  func.func @transform_1(%arg0: i32, %arg1: i32) -> (i32, i32, i32) {
    %c0_i32 = arith.constant 0 : i32
    %c0_i32_0 = arith.constant 0 : i32
    return %arg0, %c0_i32, %arg1 : i32, i32, i32
  }
  func.func @transform_2(%arg0: i32, %arg1: i32) -> (i32, i32) {
    %c0_i32 = arith.constant 0 : i32
    %c0_i32_0 = arith.constant 0 : i32
    %c0_i32_1 = arith.constant 0 : i32
    return %c0_i32, %c0_i32_0 : i32, i32
  }
  func.func @transform_3(%arg0: i32, %arg1: i32) -> (i32, i32) {
    %c0_i32 = arith.constant 0 : i32
    %c0_i32_0 = arith.constant 0 : i32
    %c0_i32_1 = arith.constant 0 : i32
    return %c0_i32, %c0_i32_0 : i32, i32
  }
  func.func @transform_4(%arg0: i32, %arg1: i32) -> (i32, i32) {
    %c0_i32 = arith.constant 0 : i32
    %c0_i32_0 = arith.constant 0 : i32
    %c0_i32_1 = arith.constant 0 : i32
    return %c0_i32, %c0_i32_0 : i32, i32
  }
  func.func @transform_5(%arg0: i32, %arg1: i32) -> (i32, i32) {
    %c0_i32 = arith.constant 0 : i32
    %c0_i32_0 = arith.constant 0 : i32
    %c0_i32_1 = arith.constant 0 : i32
    return %c0_i32, %c0_i32_0 : i32, i32
  }
  func.func @transform_6(%arg0: i32, %arg1: i32) -> (i32, i32) {
    %c1_i32 = arith.constant 1 : i32
    %0 = arith.muli %arg0, %c1_i32 : i32
    %1 = arith.addi %0, %arg1 : i32
    %c0_i32 = arith.constant 0 : i32
    %c0_i32_0 = arith.constant 0 : i32
    return %c0_i32, %1 : i32, i32
  }
}

</mosaic_0001>

<llo_original>
// kernel: tpu_custom_call.1
$region0: #{tpu_custom_call.1}
  #allocation0 [shape = 'u32[]', space=smem, size = 0x4, offset = 0x4, fixed_abs, tag = 'smem constant byte address 0x4 - core index']
  #allocation1 [shape = 'u32[144,128]{1,0:T(1,128)}', space=vmem, size = 0x12000, scoped, tag = 'internal scratch']
  %s0 = inlined_call_operand.hbm [shape: f32[2,4,256], index: 0, kind: input, shape index: {}]
  %s1 = inlined_call_operand.hbm [shape: f32[2,4,256], index: 1, kind: input, shape index: {}]
  %s2 = inlined_call_operand.hbm [shape: f32[4,8], index: 2, kind: input, shape index: {}]
  %s3 = inlined_call_operand.vmem [shape: f32[1,4], index: 3, kind: input, shape index: {}]
  %s4 = inlined_call_operand.vmem [shape: f32[2,4], index: 4, kind: input, shape index: {}]
  %s5 = inlined_call_operand.vmem [shape: f32[1,2], index: 5, kind: input, shape index: {}]
  %s6 = inlined_call_operand.hbm [shape: f32[2,512], index: 6, kind: output, shape index: {}]
  %s7 = sld [smem:[#allocation0]]
  $region81: #{tpu_custom_call.1} parent=0
    _
  %s9 = ssub.s32 1, %s7
  %s10 = scalar_select 0, %s9, %s7
  $region1: #{tpu_custom_call.1} parent=0
    #allocation2 [shape = 'u8[8192]{0}', space=vmem, size = 0x2000, scoped, tag = 'input window, operand 0']
    #allocation3 [shape = 's32[2]{0}', space=sflag, size = 0x8, scoped, tag = 'scoped memory for tpu_custom_call.1']
    #allocation4 [shape = 's32[2]{0}', space=sflag, size = 0x8, scoped, tag = 'scoped memory for tpu_custom_call.1']
    #allocation5 [shape = 's32[2]{0}', space=sflag, size = 0x8, scoped, tag = 'scoped memory for tpu_custom_call.1']
    #allocation6 [shape = 's32[2]{0}', space=sflag, size = 0x8, scoped, tag = 'scoped memory for tpu_custom_call.1']
    #allocation7 [shape = 'u8[8192]{0}', space=vmem, size = 0x2000, scoped, tag = 'input window, operand 1']
    #allocation8 [shape = 's32[2]{0}', space=sflag, size = 0x8, scoped, tag = 'scoped memory for tpu_custom_call.1']
    #allocation9 [shape = 'u8[2048]{0}', space=smem, size = 0x800, scoped, tag = 'input window, operand 2, single buffered']
    #allocation10 [shape = 'u8[512]{0}', space=smem, size = 0x200, scoped, tag = 'input window, operand 3, single buffered']
    #allocation11 [shape = 'u8[1024]{0}', space=smem, size = 0x400, scoped, tag = 'input window, operand 4, single buffered']
    #allocation12 [shape = 's32[1]{0}', space=sflag, size = 0x4, scoped, tag = 'scoped memory for tpu_custom_call.1']
    #allocation13 [shape = 'u8[512]{0}', space=smem, size = 0x200, scoped, tag = 'input window, operand 5, single buffered']
    #allocation14 [shape = 'u8[4096]{0}', space=vmem, size = 0x1000, scoped, tag = 'output window, operand 0']
    %11 = vsyncpa [#allocation3], 0
    %s12 = scalar_lea.sflag [#allocation3], 1
    %13 = vsyncpa %s12, 0
    %14 = vsyncpa [#allocation8], 0
    %s15 = scalar_lea.sflag [#allocation8], 1
    %16 = vsyncpa %s15, 0
    %17 = vsyncpa [#allocation5], 0
    %18 = vsyncpa [#allocation6], 0
    %19 = vsyncpa [#allocation12], 0
    %20 = vsyncpa [#allocation4], 0
    %s21 = scalar_lea.sflag [#allocation4], 1
    %22 = vsyncpa %s21, 0
    loop: start=0, step=1, limit=4
    $region2: #{tpu_custom_call.1} parent=1 // loop_pre_header
      _
    $region3: #{tpu_custom_call.1} parent=1 // loop_header
      %s24 = sphi 0, %s28
      %p25 = scmp.ge.s32.totalorder %s24, 4
      %s31 = sphi 0, %s43
      %s32 = sphi 0, %s39
      %s33 = sphi 0, %s31
      %s34 = sphi 0, %s32
      %s35 = sphi 0, %s33
      %s36 = sphi 0, %s34
      %s48 = sphi 0, %s50
      %s51 = sphi 0, %s48
      %s52 = sphi 0, %s51
      %s68 = sphi 0, %s52
      %s76 = sphi 0, %s78
      %s79 = sphi 0, %s76
      %s80 = sphi 0, %s79
      %s96 = sphi 0, %s80
      %s100 = sphi 0, %s100
      %s102 = sphi 0, %s100
      %s103 = sphi 0, %s102
      %s117 = sphi 0, %s103
      %s121 = sphi 0, %s121
      %s123 = sphi 0, %s121
      %s124 = sphi 0, %s123
      %s138 = sphi 0, %s124
      %s142 = sphi 0, %s142
      %s144 = sphi 0, %s142
      %s145 = sphi 0, %s144
      %s159 = sphi 0, %s145
      %s163 = sphi 0, %s163
      %s165 = sphi 0, %s163
      %s166 = sphi 0, %s165
      %s180 = sphi 0, %s166
      %s188 = sphi 0, %s190
      %s191 = sphi 0, %s188
      %s192 = sphi 0, %s191
      %s208 = sphi 0, %s192
    $region4: #{tpu_custom_call.1} parent=1 // loop_header_branch
      %27 = sbr.rel (%p25) target = $region8
    $region5: #{tpu_custom_call.1} parent=1 // loop_body
      %s29 = ssub.s32 %s24, 1
      %s30 = ssub.s32 %s24, 2
      %s37 = sadd.s32 1, %s32
      %p38 = scmp.ge.s32.totalorder %s37, 1
      %s39 = scalar_select %p38, 0, %s37
      %s40 = sadd.s32 1, %s31
      %s41 = scalar_select %p38, %s40, %s31
      %p42 = scmp.ge.s32.totalorder %s41, 2
      %s43 = scalar_select %p42, 0, %s41
      %s44 = ssub.s32 %s31, %s43
      %s45 = ssub.s32 %s32, %s39
      %s46 = sor.u32 %s44, %s45
      %p47 = scmp.eq.s32.totalorder %s46, 0
      %s49 = sadd.s32 %s48, 1
      %s50 = scalar_select %p47, %s48, %s49
      %p53 = pneg %p47
      %p54 = scmp.eq.s32.totalorder %s24, 1
      %p55 = por %p53, %p54
      %p56 = scmp.ne.s32.totalorder %s48, %s51
      %p57 = scmp.eq.s32.totalorder %s24, 0
      %p58 = por %p56, %p57
      %p59 = scmp.ne.s32.totalorder %s48, %s51
      %p60 = scmp.eq.s32.totalorder %s29, 1
      %p61 = por %p59, %p60
      %p62 = scmp.ne.s32.totalorder %s51, %s52
      %p63 = scmp.eq.s32.totalorder %s29, 0
      %p64 = por %p62, %p63
      %p65 = scmp.ne.s32.totalorder %s51, %s52
      %p66 = scmp.eq.s32.totalorder %s30, 1
      %p67 = por %p65, %p66
      %p69 = scmp.ne.s32.totalorder %s52, %s68
      %p70 = scmp.eq.s32.totalorder %s30, 0
      %p71 = por %p69, %p70
      %s72 = ssub.s32 %s31, %s43
      %s73 = ssub.s32 %s32, %s39
      %s74 = sor.u32 %s72, %s73
      %p75 = scmp.eq.s32.totalorder %s74, 0
      %s77 = sadd.s32 %s76, 1
      %s78 = scalar_select %p75, %s76, %s77
      %p81 = pneg %p75
      %p82 = scmp.eq.s32.totalorder %s24, 1
      %p83 = por %p81, %p82
      %p84 = scmp.ne.s32.totalorder %s76, %s79
      %p85 = scmp.eq.s32.totalorder %s24, 0
      %p86 = por %p84, %p85
      %p87 = scmp.ne.s32.totalorder %s76, %s79
      %p88 = scmp.eq.s32.totalorder %s29, 1
      %p89 = por %p87, %p88
      %p90 = scmp.ne.s32.totalorder %s79, %s80
      %p91 = scmp.eq.s32.totalorder %s29, 0
      %p92 = por %p90, %p91
      %p93 = scmp.ne.s32.totalorder %s79, %s80
      %p94 = scmp.eq.s32.totalorder %s30, 1
      %p95 = por %p93, %p94
      %p97 = scmp.ne.s32.totalorder %s80, %s96
      %p98 = scmp.eq.s32.totalorder %s30, 0
      %p99 = por %p97, %p98
      %s101 = sadd.s32 %s100, 1
      %p104 = scmp.eq.s32.totalorder %s24, 1
      %p105 = scmp.ne.s32.totalorder %s100, %s102
      %p106 = scmp.eq.s32.totalorder %s24, 0
      %p107 = por %p105, %p106
      %p108 = scmp.ne.s32.totalorder %s100, %s102
      %p109 = scmp.eq.s32.totalorder %s29, 1
      %p110 = por %p108, %p109
      %p111 = scmp.ne.s32.totalorder %s102, %s103
      %p112 = scmp.eq.s32.totalorder %s29, 0
      %p113 = por %p111, %p112
      %p114 = scmp.ne.s32.totalorder %s102, %s103
      %p115 = scmp.eq.s32.totalorder %s30, 1
      %p116 = por %p114, %p115
      %p118 = scmp.ne.s32.totalorder %s103, %s117
      %p119 = scmp.eq.s32.totalorder %s30, 0
      %p120 = por %p118, %p119
      %s122 = sadd.s32 %s121, 1
      %p125 = scmp.eq.s32.totalorder %s24, 1
      %p126 = scmp.ne.s32.totalorder %s121, %s123
      %p127 = scmp.eq.s32.totalorder %s24, 0
      %p128 = por %p126, %p127
      %p129 = scmp.ne.s32.totalorder %s121, %s123
      %p130 = scmp.eq.s32.totalorder %s29, 1
      %p131 = por %p129, %p130
      %p132 = scmp.ne.s32.totalorder %s123, %s124
      %p133 = scmp.eq.s32.totalorder %s29, 0
      %p134 = por %p132, %p133
      %p135 = scmp.ne.s32.totalorder %s123, %s124
      %p136 = scmp.eq.s32.totalorder %s30, 1
      %p137 = por %p135, %p136
      %p139 = scmp.ne.s32.totalorder %s124, %s138
      %p140 = scmp.eq.s32.totalorder %s30, 0
      %p141 = por %p139, %p140
      %s143 = sadd.s32 %s142, 1
      %p146 = scmp.eq.s32.totalorder %s24, 1
      %p147 = scmp.ne.s32.totalorder %s142, %s144
      %p148 = scmp.eq.s32.totalorder %s24, 0
      %p149 = por %p147, %p148
      %p150 = scmp.ne.s32.totalorder %s142, %s144
      %p151 = scmp.eq.s32.totalorder %s29, 1
      %p152 = por %p150, %p151
      %p153 = scmp.ne.s32.totalorder %s144, %s145
      %p154 = scmp.eq.s32.totalorder %s29, 0
      %p155 = por %p153, %p154
      %p156 = scmp.ne.s32.totalorder %s144, %s145
      %p157 = scmp.eq.s32.totalorder %s30, 1
      %p158 = por %p156, %p157
      %p160 = scmp.ne.s32.totalorder %s145, %s159
      %p161 = scmp.eq.s32.totalorder %s30, 0
      %p162 = por %p160, %p161
      %s164 = sadd.s32 %s163, 1
      %p167 = scmp.eq.s32.totalorder %s24, 1
      %p168 = scmp.ne.s32.totalorder %s163, %s165
      %p169 = scmp.eq.s32.totalorder %s24, 0
      %p170 = por %p168, %p169
      %p171 = scmp.ne.s32.totalorder %s163, %s165
      %p172 = scmp.eq.s32.totalorder %s29, 1
      %p173 = por %p171, %p172
      %p174 = scmp.ne.s32.totalorder %s165, %s166
      %p175 = scmp.eq.s32.totalorder %s29, 0
      %p176 = por %p174, %p175
      %p177 = scmp.ne.s32.totalorder %s165, %s166
      %p178 = scmp.eq.s32.totalorder %s30, 1
      %p179 = por %p177, %p178
      %p181 = scmp.ne.s32.totalorder %s166, %s180
      %p182 = scmp.eq.s32.totalorder %s30, 0
      %p183 = por %p181, %p182
      %s184 = sadd.s32 %s31, %s32
      %s185 = sadd.s32 %s43, %s39
      %s186 = ssub.s32 %s184, %s185
      %p187 = scmp.eq.s32.totalorder %s186, 0
      %s189 = sadd.s32 %s188, 1
      %s190 = scalar_select %p187, %s188, %s189
      %p193 = pneg %p187
      %p194 = scmp.eq.s32.totalorder %s24, 1
      %p195 = por %p193, %p194
      %p196 = scmp.ne.s32.totalorder %s188, %s191
      %p197 = scmp.eq.s32.totalorder %s24, 0
      %p198 = por %p196, %p197
      %p199 = scmp.ne.s32.totalorder %s188, %s191
      %p200 = scmp.eq.s32.totalorder %s29, 1
      %p201 = por %p199, %p200
      %p202 = scmp.ne.s32.totalorder %s191, %s192
      %p203 = scmp.eq.s32.totalorder %s29, 0
      %p204 = por %p202, %p203
      %p205 = scmp.ne.s32.totalorder %s191, %s192
      %p206 = scmp.eq.s32.totalorder %s30, 1
      %p207 = por %p205, %p206
      %p209 = scmp.ne.s32.totalorder %s192, %s208
      %p210 = scmp.eq.s32.totalorder %s30, 0
      %p211 = por %p209, %p210
      %p212 = scmp.le.s32.totalorder 1, %s24
      %p213 = scmp.lt.s32.totalorder %s24, 3
      %p214 = pnand %p212, %p213
      %p215 = pneg %p214
      // Predicated region
      $region9: #{tpu_custom_call.1} parent=5 // pred_check
        _
      $region10: #{tpu_custom_call.1} parent=5 // pred_check_branch
        %217 = sbr.rel (%p214) target = $region12
      $region11: #{tpu_custom_call.1} parent=5 // pred_region
        %s218 = ssub.s32 %s24, 1
        // Predicated region
        $region13: #{tpu_custom_call.1} parent=11 // pred_check
          %p219 = pneg %p113
        $region14: #{tpu_custom_call.1} parent=11 // pred_check_branch
          %221 = sbr.rel (%p219) target = $region16
        $region15: #{tpu_custom_call.1} parent=11 // pred_region
          %s223 = ssub.s32 64, 64
          %224 = vsyncadd [#allocation5], %s223
          %227 = dma.hbm_to_smem %s2, 64, [#allocation9], [#allocation5]
        $region16: #{tpu_custom_call.1} parent=11 // pred_fallthru
          _
        // Predicated region
        $region17: #{tpu_custom_call.1} parent=11 // pred_check
          %p228 = pneg %p134
        $region18: #{tpu_custom_call.1} parent=11 // pred_check_branch
          %230 = sbr.rel (%p228) target = $region20
        $region19: #{tpu_custom_call.1} parent=11 // pred_region
          %s232 = ssub.s32 16, 16
          %233 = vsyncadd [#allocation6], %s232
          %s235 = sshll.u32 %s3, 4
          %s236 = int_to_ptr.vmem [resolvable:$true] %s235
          %238 = dma.vmem_to_smem %s236, 16, [#allocation10], [#allocation6]
        $region20: #{tpu_custom_call.1} parent=11 // pred_fallthru
          _
        // Predicated region
        $region21: #{tpu_custom_call.1} parent=11 // pred_check
          %p239 = pneg %p155
        $region22: #{tpu_custom_call.1} parent=11 // pred_check_branch
          %241 = sbr.rel (%p239) target = $region24
        $region23: #{tpu_custom_call.1} parent=11 // pred_region
          %s243 = ssub.s32 32, 32
          %244 = vsyncadd [#allocation12], %s243
          %s246 = sshll.u32 %s4, 4
          %s247 = int_to_ptr.vmem [resolvable:$true] %s246
          %249 = dma.vmem_to_smem %s247, 32, [#allocation11], [#allocation12]
        $region24: #{tpu_custom_call.1} parent=11 // pred_fallthru
          _
        // Predicated region
        $region25: #{tpu_custom_call.1} parent=11 // pred_check
          %p250 = pneg %p176
        $region26: #{tpu_custom_call.1} parent=11 // pred_check_branch
          %252 = sbr.rel (%p250) target = $region28
        $region27: #{tpu_custom_call.1} parent=11 // pred_region
          %s254 = ssub.s32 16, 16
          %255 = vsyncadd [#allocation12], %s254
          %s257 = sshll.u32 %s5, 4
          %s258 = int_to_ptr.vmem [resolvable:$true] %s257
          %260 = dma.vmem_to_smem %s258, 16, [#allocation13], [#allocation12]
        $region28: #{tpu_custom_call.1} parent=11 // pred_fallthru
          _
      $region12: #{tpu_custom_call.1} parent=5 // pred_fallthru
        _
      %p261 = scmp.lt.s32.totalorder %s24, 2
      // Predicated region
      $region29: #{tpu_custom_call.1} parent=5 // pred_check
        %p262 = pneg %p261
      $region30: #{tpu_custom_call.1} parent=5 // pred_check_branch
        %264 = sbr.rel (%p262) target = $region32
      $region31: #{tpu_custom_call.1} parent=5 // pred_region
        // Predicated region
        $region33: #{tpu_custom_call.1} parent=31 // pred_check
          %p265 = pneg %p58
        $region34: #{tpu_custom_call.1} parent=31 // pred_check_branch
          %267 = sbr.rel (%p265) target = $region36
        $region35: #{tpu_custom_call.1} parent=31 // pred_region
          %s268 = sand.u32 %s48, 1
          %s269 = scalar_lea.sflag [#allocation3], %s268
          %s270 = sand.u32 %s48, 1
          %s271 = smul.addr %s270, 8
          %s272 = scalar_lea.vmem [#allocation2], %s271
          %s273 = smul.u32 2, %s32
          %s275 = ssub.s32 128, 128
          %276 = vsyncadd %s269, %s275
          %s277 = smul.addr %s31, 2
          %s278 = sadd.s32 %s273, %s277
          %s279 = smul.addr %s278, 64
          %s280 = scalar_lea.hbm %s0, %s279
          %s282 = sshll.u32 %s272, 4
          %s283 = int_to_ptr.vmem [resolvable:$true] %s282
          %285 = dma.hbm_to_vmem [thread:$0]  %s280, 128, %s283, %s269
        $region36: #{tpu_custom_call.1} parent=31 // pred_fallthru
          _
        // Predicated region
        $region37: #{tpu_custom_call.1} parent=31 // pred_check
          %p286 = pneg %p86
        $region38: #{tpu_custom_call.1} parent=31 // pred_check_branch
          %288 = sbr.rel (%p286) target = $region40
        $region39: #{tpu_custom_call.1} parent=31 // pred_region
          %s289 = sand.u32 %s76, 1
          %s290 = scalar_lea.sflag [#allocation8], %s289
          %s291 = sand.u32 %s76, 1
          %s292 = smul.addr %s291, 8
          %s293 = scalar_lea.vmem [#allocation7], %s292
          %s294 = smul.u32 2, %s32
          %s296 = ssub.s32 128, 128
          %297 = vsyncadd %s290, %s296
          %s298 = smul.addr %s31, 2
          %s299 = sadd.s32 %s294, %s298
          %s300 = smul.addr %s299, 64
          %s301 = scalar_lea.hbm %s1, %s300
          %s303 = sshll.u32 %s293, 4
          %s304 = int_to_ptr.vmem [resolvable:$true] %s303
          %306 = dma.hbm_to_vmem [thread:$0]  %s301, 128, %s304, %s290
        $region40: #{tpu_custom_call.1} parent=31 // pred_fallthru
          _
      $region32: #{tpu_custom_call.1} parent=5 // pred_fallthru
        _
      %p307 = scmp.le.s32.totalorder 1, %s24
      %p308 = scmp.lt.s32.totalorder %s24, 3
      %p309 = pnand %p307, %p308
      %p310 = pneg %p309
      // Predicated region
      $region41: #{tpu_custom_call.1} parent=5 // pred_check
        _
      $region42: #{tpu_custom_call.1} parent=5 // pred_check_branch
        %312 = sbr.rel (%p309) target = $region44
      $region43: #{tpu_custom_call.1} parent=5 // pred_region
        %s313 = ssub.s32 %s24, 1
        %s314 = sand.u32 %s51, 1
        %s315 = scalar_lea.sflag [#allocation3], %s314
        %s316 = sand.u32 %s51, 1
        %s317 = smul.addr %s316, 8
        %s318 = scalar_lea.vmem [#allocation2], %s317
        // Predicated region
        $region45: #{tpu_custom_call.1} parent=43 // pred_check
          %p319 = pneg %p64
        $region46: #{tpu_custom_call.1} parent=43 // pred_check_branch
          %321 = sbr.rel (%p319) target = $region48
        $region47: #{tpu_custom_call.1} parent=43 // pred_region
          %322 = dma.done %s315, 128
        $region48: #{tpu_custom_call.1} parent=43 // pred_fallthru
          _
        %s323 = sand.u32 %s79, 1
        %s324 = scalar_lea.sflag [#allocation8], %s323
        %s325 = sand.u32 %s79, 1
        %s326 = smul.addr %s325, 8
        %s327 = scalar_lea.vmem [#allocation7], %s326
        // Predicated region
        $region49: #{tpu_custom_call.1} parent=43 // pred_check
          %p328 = pneg %p92
        $region50: #{tpu_custom_call.1} parent=43 // pred_check_branch
          %330 = sbr.rel (%p328) target = $region52
        $region51: #{tpu_custom_call.1} parent=43 // pred_region
          %331 = dma.done %s324, 128
        $region52: #{tpu_custom_call.1} parent=43 // pred_fallthru
          _
        // Predicated region
        $region53: #{tpu_custom_call.1} parent=43 // pred_check
          %p332 = pneg %p113
        $region54: #{tpu_custom_call.1} parent=43 // pred_check_branch
          %334 = sbr.rel (%p332) target = $region56
        $region55: #{tpu_custom_call.1} parent=43 // pred_region
          %335 = dma.done [#allocation5], 64
        $region56: #{tpu_custom_call.1} parent=43 // pred_fallthru
          _
        // Predicated region
        $region57: #{tpu_custom_call.1} parent=43 // pred_check
          %p336 = pneg %p134
        $region58: #{tpu_custom_call.1} parent=43 // pred_check_branch
          %338 = sbr.rel (%p336) target = $region60
        $region59: #{tpu_custom_call.1} parent=43 // pred_region
          %339 = dma.done [#allocation6], 16
        $region60: #{tpu_custom_call.1} parent=43 // pred_fallthru
          _
        // Predicated region
        $region61: #{tpu_custom_call.1} parent=43 // pred_check
          %p340 = pneg %p155
        $region62: #{tpu_custom_call.1} parent=43 // pred_check_branch
          %342 = sbr.rel (%p340) target = $region64
        $region63: #{tpu_custom_call.1} parent=43 // pred_region
          %343 = dma.done [#allocation12], 32
        $region64: #{tpu_custom_call.1} parent=43 // pred_fallthru
          _
        // Predicated region
        $region65: #{tpu_custom_call.1} parent=43 // pred_check
          %p344 = pneg %p176
        $region66: #{tpu_custom_call.1} parent=43 // pred_check_branch
          %346 = sbr.rel (%p344) target = $region68
        $region67: #{tpu_custom_call.1} parent=43 // pred_region
          %347 = dma.done [#allocation12], 16
        $region68: #{tpu_custom_call.1} parent=43 // pred_fallthru
          _
        %348 = sfence
        %s349 = sand.u32 %s51, 1
        %s350 = scalar_lea.sflag [#allocation3], %s349
        %s351 = sand.u32 %s51, 1
        %s352 = smul.addr %s351, 8
        %s353 = scalar_lea.vmem [#allocation2], %s352
        %p354 = pneg %p64
        %p355 = pneg %p61
        %s356 = sand.u32 %s79, 1
        %s357 = scalar_lea.sflag [#allocation8], %s356
        %s358 = sand.u32 %s79, 1
        %s359 = smul.addr %s358, 8
        %s360 = scalar_lea.vmem [#allocation7], %s359
        %p361 = pneg %p92
        %p362 = pneg %p89
        %p363 = pneg %p113
        %p364 = pneg %p110
        %p365 = pneg %p134
        %p366 = pneg %p131
        %p367 = pneg %p155
        %p368 = pneg %p152
        %p369 = pneg %p176
        %p370 = pneg %p173
        %p371 = pneg %p204
        %p372 = pneg %p201
        %s373 = sand.u32 %s191, 1
        %s374 = scalar_lea.sflag [#allocation4], %s373
        %s375 = sand.u32 %s191, 1
        %s376 = smul.addr %s375, 4
        %s377 = scalar_lea.vmem [#allocation14], %s376
        %s378 = smul.u32 2, %s34
        %s379 = smul.u32 2, %s34
        %s380 = sadd.s32 %s33, %s34
        %s381 = smul.u32 2, %s380
        %v382 = vld [vmem:[%s318] sm:$0xff]
        %v383 = vld [vmem:[%s327] sm:$0xff]
        %s384 = sld [smem:[#allocation9]]
        %v385 = vstv %s384
        %v386 = vmul.f32 %v385, %v382
        %s387 = sld [smem:[#allocation9 + $0x1]]
        %v388 = vstv %s387
        %v389 = vmul.f32 %v388, %v382
        %v391 = vrot.slane %v389, 5
        %v392 = vrot.slane %v391, 4
        %v394 = vadd.f32 %v386, %v392
        %s395 = sld [smem:[#allocation9 + $0x2]]
        %v396 = vstv %s395
        %v397 = vmul.f32 %v396, %v382
        %v399 = vrot.slane %v397, 6
        %v400 = vrot.slane %v399, 4
        %v402 = vadd.f32 %v394, %v400
        %s403 = sld [smem:[#allocation9 + $0x3]]
        %v404 = vstv %s403
        %v405 = vmul.f32 %v404, %v382
        %v407 = vrot.slane %v405, 7
        %v408 = vrot.slane %v407, 4
        %v410 = vadd.f32 %v402, %v408
        %s411 = sld [smem:[#allocation9 + $0x4]]
        %v412 = vstv %s411
        %v413 = vmul.f32 %v412, %v383
        %v414 = vadd.f32 %v410, %v413
        %s415 = sld [smem:[#allocation9 + $0x5]]
        %v416 = vstv %s415
        %v417 = vmul.f32 %v416, %v383
        %v419 = vrot.slane %v417, 5
        %v420 = vrot.slane %v419, 4
        %v422 = vadd.f32 %v414, %v420
        %s423 = sld [smem:[#allocation9 + $0x6]]
        %v424 = vstv %s423
        %v425 = vmul.f32 %v424, %v383
        %v427 = vrot.slane %v425, 6
        %v428 = vrot.slane %v427, 4
        %v430 = vadd.f32 %v422, %v428
        %s431 = sld [smem:[#allocation9 + $0x7]]
        %v432 = vstv %s431
        %v433 = vmul.f32 %v432, %v383
        %v435 = vrot.slane %v433, 7
        %v436 = vrot.slane %v435, 4
        %v438 = vadd.f32 %v430, %v436
        %s439 = sld [smem:[#allocation10]]
        %v440 = vstv %s439
        %v441 = vadd.f32 %v438, %v440
        %v442 = vmax.f32 %v441, 0.0
        %s443 = sld [smem:[#allocation9 + $0x80]]
        %v444 = vstv %s443
        %v445 = vmul.f32 %v444, %v382
        %s446 = sld [smem:[#allocation9 + $0x81]]
        %v447 = vstv %s446
        %v448 = vmul.f32 %v447, %v382
        %v450 = vrot.slane %v448, 5
        %v451 = vrot.slane %v450, 4
        %v453 = vadd.f32 %v445, %v451
        %s454 = sld [smem:[#allocation9 + $0x82]]
        %v455 = vstv %s454
        %v456 = vmul.f32 %v455, %v382
        %v458 = vrot.slane %v456, 6
        %v459 = vrot.slane %v458, 4
        %v461 = vadd.f32 %v453, %v459
        %s462 = sld [smem:[#allocation9 + $0x83]]
        %v463 = vstv %s462
        %v464 = vmul.f32 %v463, %v382
        %v466 = vrot.slane %v464, 7
        %v467 = vrot.slane %v466, 4
        %v469 = vadd.f32 %v461, %v467
        %s470 = sld [smem:[#allocation9 + $0x84]]
        %v471 = vstv %s470
        %v472 = vmul.f32 %v471, %v383
        %v473 = vadd.f32 %v469, %v472
        %s474 = sld [smem:[#allocation9 + $0x85]]
        %v475 = vstv %s474
        %v476 = vmul.f32 %v475, %v383
        %v478 = vrot.slane %v476, 5
        %v479 = vrot.slane %v478, 4
        %v481 = vadd.f32 %v473, %v479
        %s482 = sld [smem:[#allocation9 + $0x86]]
        %v483 = vstv %s482
        %v484 = vmul.f32 %v483, %v383
        %v486 = vrot.slane %v484, 6
        %v487 = vrot.slane %v486, 4
        %v489 = vadd.f32 %v481, %v487
        %s490 = sld [smem:[#allocation9 + $0x87]]
        %v491 = vstv %s490
        %v492 = vmul.f32 %v491, %v383
        %v494 = vrot.slane %v492, 7
        %v495 = vrot.slane %v494, 4
        %v497 = vadd.f32 %v489, %v495
        %s498 = sld [smem:[#allocation10 + $0x1]]
        %v499 = vstv %s498
        %v500 = vadd.f32 %v497, %v499
        %v501 = vmax.f32 %v500, 0.0
        %s502 = sld [smem:[#allocation9 + $0x100]]
        %v503 = vstv %s502
        %v504 = vmul.f32 %v503, %v382
        %s505 = sld [smem:[#allocation9 + $0x101]]
        %v506 = vstv %s505
        %v507 = vmul.f32 %v506, %v382
        %v509 = vrot.slane %v507, 5
        %v510 = vrot.slane %v509, 4
        %v512 = vadd.f32 %v504, %v510
        %s513 = sld [smem:[#allocation9 + $0x102]]
        %v514 = vstv %s513
        %v515 = vmul.f32 %v514, %v382
        %v517 = vrot.slane %v515, 6
        %v518 = vrot.slane %v517, 4
        %v520 = vadd.f32 %v512, %v518
        %s521 = sld [smem:[#allocation9 + $0x103]]
        %v522 = vstv %s521
        %v523 = vmul.f32 %v522, %v382
        %v525 = vrot.slane %v523, 7
        %v526 = vrot.slane %v525, 4
        %v528 = vadd.f32 %v520, %v526
        %s529 = sld [smem:[#allocation9 + $0x104]]
        %v530 = vstv %s529
        %v531 = vmul.f32 %v530, %v383
        %v532 = vadd.f32 %v528, %v531
        %s533 = sld [smem:[#allocation9 + $0x105]]
        %v534 = vstv %s533
        %v535 = vmul.f32 %v534, %v383
        %v537 = vrot.slane %v535, 5
        %v538 = vrot.slane %v537, 4
        %v540 = vadd.f32 %v532, %v538
        %s541 = sld [smem:[#allocation9 + $0x106]]
        %v542 = vstv %s541
        %v543 = vmul.f32 %v542, %v383
        %v545 = vrot.slane %v543, 6
        %v546 = vrot.slane %v545, 4
        %v548 = vadd.f32 %v540, %v546
        %s549 = sld [smem:[#allocation9 + $0x107]]
        %v550 = vstv %s549
        %v551 = vmul.f32 %v550, %v383
        %v553 = vrot.slane %v551, 7
        %v554 = vrot.slane %v553, 4
        %v556 = vadd.f32 %v548, %v554
        %s557 = sld [smem:[#allocation10 + $0x2]]
        %v558 = vstv %s557
        %v559 = vadd.f32 %v556, %v558
        %v560 = vmax.f32 %v559, 0.0
        %s561 = sld [smem:[#allocation9 + $0x180]]
        %v562 = vstv %s561
        %v563 = vmul.f32 %v562, %v382
        %s564 = sld [smem:[#allocation9 + $0x181]]
        %v565 = vstv %s564
        %v566 = vmul.f32 %v565, %v382
        %v568 = vrot.slane %v566, 5
        %v569 = vrot.slane %v568, 4
        %v571 = vadd.f32 %v563, %v569
        %s572 = sld [smem:[#allocation9 + $0x182]]
        %v573 = vstv %s572
        %v574 = vmul.f32 %v573, %v382
        %v576 = vrot.slane %v574, 6
        %v577 = vrot.slane %v576, 4
        %v579 = vadd.f32 %v571, %v577
        %s580 = sld [smem:[#allocation9 + $0x183]]
        %v581 = vstv %s580
        %v582 = vmul.f32 %v581, %v382
        %v584 = vrot.slane %v582, 7
        %v585 = vrot.slane %v584, 4
        %v587 = vadd.f32 %v579, %v585
        %s588 = sld [smem:[#allocation9 + $0x184]]
        %v589 = vstv %s588
        %v590 = vmul.f32 %v589, %v383
        %v591 = vadd.f32 %v587, %v590
        %s592 = sld [smem:[#allocation9 + $0x185]]
        %v593 = vstv %s592
        %v594 = vmul.f32 %v593, %v383
        %v596 = vrot.slane %v594, 5
        %v597 = vrot.slane %v596, 4
        %v599 = vadd.f32 %v591, %v597
        %s600 = sld [smem:[#allocation9 + $0x186]]
        %v601 = vstv %s600
        %v602 = vmul.f32 %v601, %v383
        %v604 = vrot.slane %v602, 6
        %v605 = vrot.slane %v604, 4
        %v607 = vadd.f32 %v599, %v605
        %s608 = sld [smem:[#allocation9 + $0x187]]
        %v609 = vstv %s608
        %v610 = vmul.f32 %v609, %v383
        %v612 = vrot.slane %v610, 7
        %v613 = vrot.slane %v612, 4
        %v615 = vadd.f32 %v607, %v613
        %s616 = sld [smem:[#allocation10 + $0x3]]
        %v617 = vstv %s616
        %v618 = vadd.f32 %v615, %v617
        %v619 = vmax.f32 %v618, 0.0
        %s620 = sld [smem:[#allocation11]]
        %v621 = vstv %s620
        %v622 = vmul.f32 %v621, %v442
        %s623 = sld [smem:[#allocation11 + $0x1]]
        %v624 = vstv %s623
        %v625 = vmul.f32 %v624, %v501
        %v626 = vadd.f32 %v622, %v625
        %s627 = sld [smem:[#allocation11 + $0x2]]
        %v628 = vstv %s627
        %v629 = vmul.f32 %v628, %v560
        %v630 = vadd.f32 %v626, %v629
        %s631 = sld [smem:[#allocation11 + $0x3]]
        %v632 = vstv %s631
        %v633 = vmul.f32 %v632, %v619
        %v634 = vadd.f32 %v630, %v633
        %s635 = sld [smem:[#allocation13]]
        %v636 = vstv %s635
        %v637 = vadd.f32 %v634, %v636
        %v638 = vxor.u32 %v637, 2147483648
        %v639 = vmul.f32 %v638, 1.442695
        %v640 = vpow.pop %v639
        %v641 = vadd.f32 %v640, 1.0
        %v642 = vrcp.pop %v641
        %v643 = vmul.f32 1.0, %v642
        %s644 = sld [smem:[#allocation11 + $0x80]]
        %v645 = vstv %s644
        %v646 = vmul.f32 %v645, %v442
        %s647 = sld [smem:[#allocation11 + $0x81]]
        %v648 = vstv %s647
        %v649 = vmul.f32 %v648, %v501
        %v650 = vadd.f32 %v646, %v649
        %s651 = sld [smem:[#allocation11 + $0x82]]
        %v652 = vstv %s651
        %v653 = vmul.f32 %v652, %v560
        %v654 = vadd.f32 %v650, %v653
        %s655 = sld [smem:[#allocation11 + $0x83]]
        %v656 = vstv %s655
        %v657 = vmul.f32 %v656, %v619
        %v658 = vadd.f32 %v654, %v657
        %s659 = sld [smem:[#allocation13 + $0x1]]
        %v660 = vstv %s659
        %v661 = vadd.f32 %v658, %v660
        %v662 = vxor.u32 %v661, 2147483648
        %v663 = vmul.f32 %v662, 1.442695
        %v664 = vpow.pop %v663
        %v665 = vadd.f32 %v664, 1.0
        %v666 = vrcp.pop %v665
        %v667 = vmul.f32 1.0, %v666
        %v669 = vlaneseq
        %v670 = vshrl.u32 %v669, 7
        %v671 = vsub.s32 0, %v670
        %v672 = vrot.slane %v643, %v671
        %v673 = vlaneseq
        %v674 = vshrl.u32 %v673, 7
        %v675 = vsub.s32 4, %v674
        %v676 = vrot.slane %v643, %v675
        %v680 = vlaneseq
        %v681 = vshrl.u32 %v680, 7
        %v682 = vsub.s32 0, %v681
        %v683 = vrot.slane %v667, %v682
        %v684 = vlaneseq
        %v685 = vshrl.u32 %v684, 7
        %v686 = vsub.s32 4, %v685
        %v687 = vrot.slane %v667, %v686
        %vm690 = vcmask 1040384
        %v691 = vsel %vm690, %v672, %v683
        %v692 = vsel %vm690, %v676, %v687
        %v695 = vcombine.low %v691, %v692
        %v697 = vunpack.c.l.s4 1983009808
        %v698 = vunpack.c.0.s8 %v697
        %v699 = vlaneseq
        %v700 = vshrl.u32 %v699, 7
        %v701 = vsub.s32 %v698, %v700
        %v702 = vrot.slane %v695, %v701
        %704 = vst [vmem:[%s377] sm:$0xf] %v702
        %s705 = sand.u32 %s191, 1
        %s706 = scalar_lea.sflag [#allocation4], %s705
        %s707 = sand.u32 %s191, 1
        %s708 = smul.addr %s707, 4
        %s709 = scalar_lea.vmem [#allocation14], %s708
        // Predicated region
        $region69: #{tpu_custom_call.1} parent=43 // pred_check
          %p710 = pneg %p201
        $region70: #{tpu_custom_call.1} parent=43 // pred_check_branch
          %712 = sbr.rel (%p710) target = $region72
        $region71: #{tpu_custom_call.1} parent=43 // pred_region
          %s713 = sadd.s32 %s33, %s34
          %s714 = smul.u32 2, %s713
          %s716 = ssub.s32 64, 64
          %717 = vsyncadd %s706, %s716
          %s718 = smul.addr %s714, 32
          %s719 = scalar_lea.hbm %s6, %s718
          %s721 = sshll.u32 %s709, 4
          %s722 = int_to_ptr.vmem [resolvable:$true] %s721
          %724 = dma.vmem_to_hbm [thread:$0]  %s722, 64, %s719, %s706
        $region72: #{tpu_custom_call.1} parent=43 // pred_fallthru
          _
      $region44: #{tpu_custom_call.1} parent=5 // pred_fallthru
        _
      %p725 = scmp.le.s32.totalorder 2, %s24
      // Predicated region
      $region73: #{tpu_custom_call.1} parent=5 // pred_check
        %p726 = pneg %p725
      $region74: #{tpu_custom_call.1} parent=5 // pred_check_branch
        %728 = sbr.rel (%p726) target = $region76
      $region75: #{tpu_custom_call.1} parent=5 // pred_region
        %s729 = ssub.s32 %s24, 2
        // Predicated region
        $region77: #{tpu_custom_call.1} parent=75 // pred_check
          %p730 = pneg %p207
        $region78: #{tpu_custom_call.1} parent=75 // pred_check_branch
          %732 = sbr.rel (%p730) target = $region80
        $region79: #{tpu_custom_call.1} parent=75 // pred_region
          %s733 = sand.u32 %s192, 1
          %s734 = scalar_lea.sflag [#allocation4], %s733
          %s735 = sand.u32 %s192, 1
          %s736 = smul.addr %s735, 4
          %s737 = scalar_lea.vmem [#allocation14], %s736
          %738 = dma.done %s734, 64
        $region80: #{tpu_custom_call.1} parent=75 // pred_fallthru
          _
      $region76: #{tpu_custom_call.1} parent=5 // pred_fallthru
        _
    $region6: #{tpu_custom_call.1} parent=1 // loop_footer
      %s28 = sadd.s32 1, %s24
    $region7: #{tpu_custom_call.1} parent=1 // loop_footer_branch
      %23 = sbr.rel target = $region3
    $region8: #{tpu_custom_call.1} parent=1 // loop_exit
      _
    %739 = vsyncpa [#allocation3], 1
    %s740 = scalar_lea.sflag [#allocation3], 1
    %741 = vsyncpa %s740, 1
    %742 = vsyncpa [#allocation8], 1
    %s743 = scalar_lea.sflag [#allocation8], 1
    %744 = vsyncpa %s743, 1
    %745 = vsyncpa [#allocation4], 1
    %s746 = scalar_lea.sflag [#allocation4], 1
    %747 = vsyncpa %s746, 1
    %748 = vsyncpa [#allocation5], 1
    %s749 = scalar_lea.sflag [#allocation5], 1
    %750 = vsyncpa %s749, 1
    %751 = vsyncpa [#allocation6], 1
    %s752 = scalar_lea.sflag [#allocation6], 1
    %753 = vsyncpa %s752, 1
    %754 = vsyncpa [#allocation12], 1

</llo_original>
